<compile_context>
chip_gen: v6e
topology: v6e:2x2x1
jax: 0.10.0
libtpu: 0.0.40
codegen_flags: <defaults>
</compile_context>

<pallas_src>
import functools

import jax
import jax.numpy as jnp
from jax.experimental import pallas as pl
from jax.experimental.pallas import tpu as pltpu


def _silu(x):
    return x * jax.nn.sigmoid(x)


# -----------------------------------------------------------------------------
# Pallas kernel: one grid step = one batch tile (NB elements) folded into rows.
# -----------------------------------------------------------------------------
def temporal_block_kernel(*refs, NB, L, Lp, K, dilation, pad, has_downsample):
    if has_downsample:
        (x_ref, w1_ref, b1_ref, w2_ref, b2_ref, wd_ref, bd_ref,
         o_ref, p_ref, q_ref) = refs
    else:
        x_ref, w1_ref, b1_ref, w2_ref, b2_ref, o_ref, p_ref, q_ref = refs
        wd_ref = bd_ref = None

    cdtype = p_ref.dtype                 # matmul operand dtype (bf16 or f32)
    cin = p_ref.shape[-1]
    cout = q_ref.shape[-1]
    M = NB * Lp                          # folded row count (incl. per-element pad)

    # ---- stage x into the causal-padded staging buffer P ---------------------
    # P rows: [pad zeros] + for each n in tile: [pad zeros ; x[n] (L rows)]
    if pad:
        p_ref[:pad, :] = jnp.zeros((pad, cin), cdtype)
    for n in range(NB):
        base = pad + n * Lp
        if pad:
            p_ref[base:base + pad, :] = jnp.zeros((pad, cin), cdtype)
        p_ref[base + pad:base + Lp, :] = x_ref[n * L:(n + 1) * L, :].astype(cdtype)

    # ---- conv1: K dilated taps, each one full-batch-tile MXU dot --------------
    h1 = jnp.zeros((M, cout), jnp.float32)
    for k in range(K):
        off = k * dilation
        h1 = h1 + jnp.dot(p_ref[off:off + M, :], w1_ref[k],
                          preferred_element_type=jnp.float32)
    h1 = _silu(h1 + b1_ref[...])          # f32 activations (v5e-safe)

    # ---- stage SiLU(conv1) into Q with the same causal layout -----------------
    if pad:
        q_ref[:pad, :] = jnp.zeros((pad, cout), cdtype)
    q_ref[pad:pad + M, :] = h1.astype(cdtype)
    if pad:
        for n in range(NB):
            base = pad + n * Lp
            q_ref[base:base + pad, :] = jnp.zeros((pad, cout), cdtype)

    # ---- conv2 -----------------------------------------------------------------
    h2 = jnp.zeros((M, cout), jnp.float32)
    for k in range(K):
        off = k * dilation
        h2 = h2 + jnp.dot(q_ref[off:off + M, :], w2_ref[k],
                          preferred_element_type=jnp.float32)
    h2 = _silu(h2 + b2_ref[...])

    # ---- residual branch: aligned read of the unpadded x block ----------------
    xb = x_ref[...]
    if has_downsample:
        res = jnp.dot(xb, wd_ref[...], preferred_element_type=jnp.float32) + bd_ref[...]
    else:
        res = xb.astype(jnp.float32)

    # ---- add + SiLU, store only the valid (non-padded) rows per element -------
    for n in range(NB):
        h2n = h2[n * Lp + pad:(n + 1) * Lp, :]
        rn = res[n * L:(n + 1) * L, :]
        o_ref[n * L:(n + 1) * L, :] = _silu(h2n + rn).astype(o_ref.dtype)


# -----------------------------------------------------------------------------
# Wrapper: NCL in -> NCL out.
# -----------------------------------------------------------------------------
def temporal_block_forward(x_ncl, w1, b1, w2, b2, wd=None, bd=None, *,
                           kernel_size, dilation, matmul_dtype=jnp.bfloat16):
    """x_ncl: (N, Cin, L) float32. Weights already weight-normed, kernel layout:
    w1: (K, Cin, Cout), w2: (K, Cout, Cout), wd: (Cin, Cout) or None,
    biases: (1, Cout). Returns (N, Cout, L)."""
    N, Cin, L = x_ncl.shape
    Cout = w1.shape[2]
    K = kernel_size
    pad = (K - 1) * dilation
    Lp = L + pad
    has_ds = wd is not None
    if not has_ds:
        assert Cin == Cout, "identity residual requires n_inputs == n_outputs"

    # Batch tiling: >=2 parallel tiles when possible (v7x has 2 TensorCores);
    # within a tile the batch is folded into the matmul M dimension.
    num_tiles = 2 if N >= 2 else 1
    NB = -(-N // num_tiles)
    if (NB * L) % 8 != 0:                # keep blocks sublane-tile friendly
        num_tiles, NB = 1, N
    Np = num_tiles * NB

    # NCL -> NLC -> (N*L, C) rows; matmul operands cast to `matmul_dtype`.
    x_nlc = jnp.transpose(x_ncl, (0, 2, 1))
    if Np != N:
        x_nlc = jnp.concatenate(
            [x_nlc, jnp.zeros((Np - N, L, Cin), x_nlc.dtype)], axis=0)
    x2d = x_nlc.reshape(Np * L, Cin).astype(matmul_dtype)
    # TODO(synk): accept/produce NLC (or store NCL from the kernel) to remove the two
    # wrapper transposes, and tile L with a `pad`-row halo for long sequences (v7x VMEM).

    in_specs = [
        pl.BlockSpec((NB * L, Cin), lambda i: (i, 0)),        # x rows (batch tile)
        pl.BlockSpec((K, Cin, Cout), lambda i: (0, 0, 0)),    # w1
        pl.BlockSpec((1, Cout), lambda i: (0, 0)),            # b1
        pl.BlockSpec((K, Cout, Cout), lambda i: (0, 0, 0)),   # w2
        pl.BlockSpec((1, Cout), lambda i: (0, 0)),            # b2
    ]
    args = [x2d,
            w1.astype(matmul_dtype), b1.astype(jnp.float32),
            w2.astype(matmul_dtype), b2.astype(jnp.float32)]
    if has_ds:
        in_specs += [pl.BlockSpec((Cin, Cout), lambda i: (0, 0)),   # wd
                     pl.BlockSpec((1, Cout), lambda i: (0, 0))]     # bd
        args += [wd.astype(matmul_dtype), bd.astype(jnp.float32)]

    kern = functools.partial(
        temporal_block_kernel,
        NB=NB, L=L, Lp=Lp, K=K, dilation=dilation, pad=pad, has_downsample=has_ds)

    out2d = pl.pallas_call(
        kern,
        out_shape=jax.ShapeDtypeStruct((Np * L, Cout), x_ncl.dtype),
        grid_spec=pltpu.PrefetchScalarGridSpec(
            num_scalar_prefetch=0,
            grid=(num_tiles,),
            in_specs=in_specs,
            out_specs=pl.BlockSpec((NB * L, Cout), lambda i: (i, 0)),
            scratch_shapes=[
                pltpu.VMEM((pad + NB * Lp, Cin), matmul_dtype),   # causal-padded x
                pltpu.VMEM((pad + NB * Lp, Cout), matmul_dtype),  # causal-padded h1
            ],
        ),
        compiler_params=pltpu.CompilerParams(
            dimension_semantics=("parallel",),
            vmem_limit_bytes=32 * 1024 * 1024),
    )(*args)

    out = out2d.reshape(Np, L, Cout)[:N]
    return jnp.transpose(out, (0, 2, 1))  # back to NCL


# -----------------------------------------------------------------------------
# Parameter construction (mimics PyTorch weight_norm semantics) + reference.
# -----------------------------------------------------------------------------
def weight_norm_conv1d_params(key, cin, cout, k):
    kv, kb = jax.random.split(key)
    v = 0.01 * jax.random.normal(kv, (cout, cin, k), jnp.float32)   # torch (O, I, K)
    vnorm = jnp.sqrt(jnp.sum(v * v, axis=(1, 2), keepdims=True))
    w = vnorm * v / vnorm          # weight_norm init: g = ||v||  =>  w == v
    fan_in = cin * k
    b = jax.random.uniform(kb, (cout,), jnp.float32,
                           -1.0 / jnp.sqrt(fan_in), 1.0 / jnp.sqrt(fan_in))
    return w, b


def pure_jax_reference(x_ncl, W1, B1, W2, B2, Wd, Bd, dilation):
    def conv(x, w, b, dil):
        p = (w.shape[2] - 1) * dil
        y = jax.lax.conv_general_dilated(
            x, w, window_strides=(1,), padding=[(p, 0)],
            rhs_dilation=(dil,), dimension_numbers=("NCH", "OIH", "NCH"),
            precision=jax.lax.Precision.HIGHEST)
        return y + b[None, :, None]

    h = jax.nn.silu(conv(x_ncl, W1, B1, dilation))
    h = jax.nn.silu(conv(h, W2, B2, dilation))
    res = x_ncl if Wd is None else conv(x_ncl, Wd, Bd, 1)
    return jax.nn.silu(h + res)


if __name__ == "__main__":
    key = jax.random.PRNGKey(0)

    # ---- config 1: TemporalBlock(4 -> 8, k=3, dilation=2, causal), has downsample
    N, Cin, Cout, L, K, dil = 2, 4, 8, 16, 3, 2
    kx, k1, k2, kd, kdb, key = jax.random.split(key, 6)
    x = jax.random.normal(kx, (N, Cin, L), jnp.float32)
    W1, B1 = weight_norm_conv1d_params(k1, Cin, Cout, K)      # (Cout, Cin, K)
    W2, B2 = weight_norm_conv1d_params(k2, Cout, Cout, K)
    Wd = 0.01 * jax.random.normal(kd, (Cout, Cin, 1), jnp.float32)
    Bd = jax.random.uniform(kdb, (Cout,), jnp.float32,
                            -1.0 / jnp.sqrt(Cin), 1.0 / jnp.sqrt(Cin))
    w1_k = jnp.transpose(W1, (2, 1, 0))                        # (K, Cin, Cout)
    w2_k = jnp.transpose(W2, (2, 1, 0))
    wd_k = jnp.transpose(Wd[:, :, 0], (1, 0))                  # (Cin, Cout)

    ref = jax.block_until_ready(pure_jax_reference(x, W1, B1, W2, B2, Wd, Bd, dil))

    # f32 matmul operands (v5e-style path), tighter tolerance
    out_f32 = jax.block_until_ready(temporal_block_forward(
        x, w1_k, B1[None, :], w2_k, B2[None, :], wd_k, Bd[None, :],
        kernel_size=K, dilation=dil, matmul_dtype=jnp.float32))
    assert out_f32.shape == (N, Cout, L), out_f32.shape
    assert jnp.allclose(out_f32, ref, rtol=5e-3, atol=5e-4), (
        float(jnp.max(jnp.abs(out_f32 - ref))))

    # bf16 matmul operands (v6e/v7x fast path), bf16-appropriate tolerance
    out_bf16 = jax.block_until_ready(temporal_block_forward(
        x, w1_k, B1[None, :], w2_k, B2[None, :], wd_k, Bd[None, :],
        kernel_size=K, dilation=dil, matmul_dtype=jnp.bfloat16))
    assert jnp.allclose(out_bf16, ref, rtol=2e-2, atol=2e-3), (
        float(jnp.max(jnp.abs(out_bf16 - ref))))

    # ---- config 2: identity residual (Cin == Cout, no downsample), odd batch size
    N2, C2, L2, K2, dil2 = 3, 8, 16, 3, 1
    kx2, ka, kb2, key = jax.random.split(key, 4)
    x2 = jax.random.normal(kx2, (N2, C2, L2), jnp.float32)
    W1b, B1b = weight_norm_conv1d_params(ka, C2, C2, K2)
    W2b, B2b = weight_norm_conv1d_params(kb2, C2, C2, K2)
    ref2 = jax.block_until_ready(
        pure_jax_reference(x2, W1b, B1b, W2b, B2b, None, None, dil2))
    out2 = jax.block_until_ready(temporal_block_forward(
        x2, jnp.transpose(W1b, (2, 1, 0)), B1b[None, :],
        jnp.transpose(W2b, (2, 1, 0)), B2b[None, :], None, None,
        kernel_size=K2, dilation=dil2, matmul_dtype=jnp.float32))
    assert out2.shape == (N2, C2, L2), out2.shape
    assert jnp.allclose(out2, ref2, rtol=5e-3, atol=5e-4), (
        float(jnp.max(jnp.abs(out2 - ref2))))

    # TODO(synk): Dropout(p) is stochastic in train mode; implemented as identity
    # (eval-mode semantics) since no RNG masking is specified for inference.
    print("KERNEL_OK")
</pallas_src>

<mosaic_0001>
module attributes {stable_mosaic.version = 11 : i64} {
  func.func @temporal_block_kernel(%arg0: i32, %arg1: memref<16x4xf32, #tpu.memory_space<vmem>>, %arg2: memref<3x4x8xf32, #tpu.memory_space<vmem>>, %arg3: memref<1x8xf32, #tpu.memory_space<vmem>>, %arg4: memref<3x8x8xf32, #tpu.memory_space<vmem>>, %arg5: memref<1x8xf32, #tpu.memory_space<vmem>>, %arg6: memref<4x8xf32, #tpu.memory_space<vmem>>, %arg7: memref<1x8xf32, #tpu.memory_space<vmem>>, %arg8: memref<16x8xf32, #tpu.memory_space<vmem>>, %arg9: memref<24x4xf32, #tpu.memory_space<vmem>>, %arg10: memref<24x8xf32, #tpu.memory_space<vmem>>) attributes {dimension_semantics = [#tpu.dimension_semantics<parallel>], iteration_bounds = array<i64: 2>, scalar_prefetch = 0 : i64, scratch_operands = 2 : i64, tpu.core_type = #tpu.core_type<tc>, window_params = [{transform_indices = @transform_0, window_bounds = array<i64: 16, 4>}, {pipeline_mode = #tpu.pipeline_mode<synchronous>, transform_indices = @transform_1, window_bounds = array<i64: 3, 4, 8>}, {pipeline_mode = #tpu.pipeline_mode<synchronous>, transform_indices = @transform_2, window_bounds = array<i64: 1, 8>}, {pipeline_mode = #tpu.pipeline_mode<synchronous>, transform_indices = @transform_3, window_bounds = array<i64: 3, 8, 8>}, {pipeline_mode = #tpu.pipeline_mode<synchronous>, transform_indices = @transform_4, window_bounds = array<i64: 1, 8>}, {pipeline_mode = #tpu.pipeline_mode<synchronous>, transform_indices = @transform_5, window_bounds = array<i64: 4, 8>}, {pipeline_mode = #tpu.pipeline_mode<synchronous>, transform_indices = @transform_6, window_bounds = array<i64: 1, 8>}, {transform_indices = @transform_7, window_bounds = array<i64: 16, 8>}]} {
    %cst = arith.constant 0.000000e+00 : f32
    %0 = vector.broadcast %cst : f32 to vector<4x4xf32>
    %c0 = arith.constant 0 : index
    %c0_0 = arith.constant 0 : index
    %1 = vector.load %arg9[%c0, %c0_0] : memref<24x4xf32, #tpu.memory_space<vmem>>, vector<4x4xf32>
    tpu.vector_store %arg9[%c0, %c0_0], %0 {strides = array<i32>} : memref<24x4xf32, #tpu.memory_space<vmem>>, vector<4x4xf32>,
    %cst_1 = arith.constant 0.000000e+00 : f32
    %2 = vector.broadcast %cst_1 : f32 to vector<4x4xf32>
    %c4 = arith.constant 4 : index
    %c0_2 = arith.constant 0 : index
    %3 = vector.load %arg9[%c4, %c0_2] : memref<24x4xf32, #tpu.memory_space<vmem>>, vector<4x4xf32>
    tpu.vector_store %arg9[%c4, %c0_2], %2 {strides = array<i32>} : memref<24x4xf32, #tpu.memory_space<vmem>>, vector<4x4xf32>,
    %c0_3 = arith.constant 0 : index
    %c0_4 = arith.constant 0 : index
    %4 = vector.load %arg1[%c0_3, %c0_4] : memref<16x4xf32, #tpu.memory_space<vmem>>, vector<16x4xf32>
    %c8 = arith.constant 8 : index
    %c0_5 = arith.constant 0 : index
    %5 = vector.load %arg9[%c8, %c0_5] : memref<24x4xf32, #tpu.memory_space<vmem>>, vector<16x4xf32>
    tpu.vector_store %arg9[%c8, %c0_5], %4 {strides = array<i32>} : memref<24x4xf32, #tpu.memory_space<vmem>>, vector<16x4xf32>,
    %cst_6 = arith.constant 0.000000e+00 : f32
    %6 = vector.broadcast %cst_6 : f32 to vector<20x8xf32>
    %c0_7 = arith.constant 0 : index
    %c0_8 = arith.constant 0 : index
    %7 = vector.load %arg9[%c0_7, %c0_8] : memref<24x4xf32, #tpu.memory_space<vmem>>, vector<20x4xf32>
    %c0_9 = arith.constant 0 : index
    %c0_10 = arith.constant 0 : index
    %c0_11 = arith.constant 0 : index
    %8 = vector.load %arg2[%c0_9, %c0_10, %c0_11] : memref<3x4x8xf32, #tpu.memory_space<vmem>>, vector<1x4x8xf32>
    %9 = vector.shape_cast %8 : vector<1x4x8xf32> to vector<4x8xf32>
    %cst_12 = arith.constant dense<0.000000e+00> : vector<20x8xf32>
    %10 = tpu.matmul %7, %9, %cst_12 {dimension_numbers = #tpu.dot_dimension_numbers<[1], [0], [0], [1], [0, 0, 1, 1], [], []>} : vector<20x4xf32>, vector<4x8xf32>, vector<20x8xf32> -> vector<20x8xf32>
    %11 = arith.addf %6, %10 : vector<20x8xf32>
    %c2 = arith.constant 2 : index
    %c0_13 = arith.constant 0 : index
    %12 = vector.load %arg9[%c2, %c0_13] : memref<24x4xf32, #tpu.memory_space<vmem>>, vector<20x4xf32>
    %c1 = arith.constant 1 : index
    %c0_14 = arith.constant 0 : index
    %c0_15 = arith.constant 0 : index
    %13 = vector.load %arg2[%c1, %c0_14, %c0_15] : memref<3x4x8xf32, #tpu.memory_space<vmem>>, vector<1x4x8xf32>
    %14 = vector.shape_cast %13 : vector<1x4x8xf32> to vector<4x8xf32>
    %cst_16 = arith.constant dense<0.000000e+00> : vector<20x8xf32>
    %15 = tpu.matmul %12, %14, %cst_16 {dimension_numbers = #tpu.dot_dimension_numbers<[1], [0], [0], [1], [0, 0, 1, 1], [], []>} : vector<20x4xf32>, vector<4x8xf32>, vector<20x8xf32> -> vector<20x8xf32>
    %16 = arith.addf %11, %15 : vector<20x8xf32>
    %c4_17 = arith.constant 4 : index
    %c0_18 = arith.constant 0 : index
    %17 = vector.load %arg9[%c4_17, %c0_18] : memref<24x4xf32, #tpu.memory_space<vmem>>, vector<20x4xf32>
    %c2_19 = arith.constant 2 : index
    %c0_20 = arith.constant 0 : index
    %c0_21 = arith.constant 0 : index
    %18 = vector.load %arg2[%c2_19, %c0_20, %c0_21] : memref<3x4x8xf32, #tpu.memory_space<vmem>>, vector<1x4x8xf32>
    %19 = vector.shape_cast %18 : vector<1x4x8xf32> to vector<4x8xf32>
    %cst_22 = arith.constant dense<0.000000e+00> : vector<20x8xf32>
    %20 = tpu.matmul %17, %19, %cst_22 {dimension_numbers = #tpu.dot_dimension_numbers<[1], [0], [0], [1], [0, 0, 1, 1], [], []>} : vector<20x4xf32>, vector<4x8xf32>, vector<20x8xf32> -> vector<20x8xf32>
    %21 = arith.addf %16, %20 : vector<20x8xf32>
    %c0_23 = arith.constant 0 : index
    %c0_24 = arith.constant 0 : index
    %22 = vector.load %arg3[%c0_23, %c0_24] : memref<1x8xf32, #tpu.memory_space<vmem>>, vector<1x8xf32>
    %23 = vector.broadcast %22 : vector<1x8xf32> to vector<20x8xf32>
    %24 = arith.addf %21, %23 : vector<20x8xf32>
    %25 = arith.negf %24 : vector<20x8xf32>
    %26 = math.exp %25 : vector<20x8xf32>
    %cst_25 = arith.constant 1.000000e+00 : f32
    %27 = vector.broadcast %cst_25 : f32 to vector<20x8xf32>
    %28 = arith.addf %27, %26 : vector<20x8xf32>
    %29 = arith.divf %27, %28 : vector<20x8xf32>
    %30 = arith.mulf %24, %29 : vector<20x8xf32>
    %cst_26 = arith.constant 0.000000e+00 : f32
    %31 = vector.broadcast %cst_26 : f32 to vector<4x8xf32>
    %c0_27 = arith.constant 0 : index
    %c0_28 = arith.constant 0 : index
    %32 = vector.load %arg10[%c0_27, %c0_28] : memref<24x8xf32, #tpu.memory_space<vmem>>, vector<4x8xf32>
    tpu.vector_store %arg10[%c0_27, %c0_28], %31 {strides = array<i32>} : memref<24x8xf32, #tpu.memory_space<vmem>>, vector<4x8xf32>,
    %c4_29 = arith.constant 4 : index
    %c0_30 = arith.constant 0 : index
    %33 = vector.load %arg10[%c4_29, %c0_30] : memref<24x8xf32, #tpu.memory_space<vmem>>, vector<20x8xf32>
    tpu.vector_store %arg10[%c4_29, %c0_30], %30 {strides = array<i32>} : memref<24x8xf32, #tpu.memory_space<vmem>>, vector<20x8xf32>,
    %cst_31 = arith.constant 0.000000e+00 : f32
    %34 = vector.broadcast %cst_31 : f32 to vector<4x8xf32>
    %c4_32 = arith.constant 4 : index
    %c0_33 = arith.constant 0 : index
    %35 = vector.load %arg10[%c4_32, %c0_33] : memref<24x8xf32, #tpu.memory_space<vmem>>, vector<4x8xf32>
    tpu.vector_store %arg10[%c4_32, %c0_33], %34 {strides = array<i32>} : memref<24x8xf32, #tpu.memory_space<vmem>>, vector<4x8xf32>,
    %cst_34 = arith.constant 0.000000e+00 : f32
    %36 = vector.broadcast %cst_34 : f32 to vector<20x8xf32>
    %c0_35 = arith.constant 0 : index
    %c0_36 = arith.constant 0 : index
    %37 = vector.load %arg10[%c0_35, %c0_36] : memref<24x8xf32, #tpu.memory_space<vmem>>, vector<20x8xf32>
    %c0_37 = arith.constant 0 : index
    %c0_38 = arith.constant 0 : index
    %c0_39 = arith.constant 0 : index
    %38 = vector.load %arg4[%c0_37, %c0_38, %c0_39] : memref<3x8x8xf32, #tpu.memory_space<vmem>>, vector<1x8x8xf32>
    %39 = vector.shape_cast %38 : vector<1x8x8xf32> to vector<8x8xf32>
    %cst_40 = arith.constant dense<0.000000e+00> : vector<20x8xf32>
    %40 = tpu.matmul %37, %39, %cst_40 {dimension_numbers = #tpu.dot_dimension_numbers<[1], [0], [0], [1], [0, 0, 1, 1], [], []>} : vector<20x8xf32>, vector<8x8xf32>, vector<20x8xf32> -> vector<20x8xf32>
    %41 = arith.addf %36, %40 : vector<20x8xf32>
    %c2_41 = arith.constant 2 : index
    %c0_42 = arith.constant 0 : index
    %42 = vector.load %arg10[%c2_41, %c0_42] : memref<24x8xf32, #tpu.memory_space<vmem>>, vector<20x8xf32>
    %c1_43 = arith.constant 1 : index
    %c0_44 = arith.constant 0 : index
    %c0_45 = arith.constant 0 : index
    %43 = vector.load %arg4[%c1_43, %c0_44, %c0_45] : memref<3x8x8xf32, #tpu.memory_space<vmem>>, vector<1x8x8xf32>
    %44 = vector.shape_cast %43 : vector<1x8x8xf32> to vector<8x8xf32>
    %cst_46 = arith.constant dense<0.000000e+00> : vector<20x8xf32>
    %45 = tpu.matmul %42, %44, %cst_46 {dimension_numbers = #tpu.dot_dimension_numbers<[1], [0], [0], [1], [0, 0, 1, 1], [], []>} : vector<20x8xf32>, vector<8x8xf32>, vector<20x8xf32> -> vector<20x8xf32>
    %46 = arith.addf %41, %45 : vector<20x8xf32>
    %c4_47 = arith.constant 4 : index
    %c0_48 = arith.constant 0 : index
    %47 = vector.load %arg10[%c4_47, %c0_48] : memref<24x8xf32, #tpu.memory_space<vmem>>, vector<20x8xf32>
    %c2_49 = arith.constant 2 : index
    %c0_50 = arith.constant 0 : index
    %c0_51 = arith.constant 0 : index
    %48 = vector.load %arg4[%c2_49, %c0_50, %c0_51] : memref<3x8x8xf32, #tpu.memory_space<vmem>>, vector<1x8x8xf32>
    %49 = vector.shape_cast %48 : vector<1x8x8xf32> to vector<8x8xf32>
    %cst_52 = arith.constant dense<0.000000e+00> : vector<20x8xf32>
    %50 = tpu.matmul %47, %49, %cst_52 {dimension_numbers = #tpu.dot_dimension_numbers<[1], [0], [0], [1], [0, 0, 1, 1], [], []>} : vector<20x8xf32>, vector<8x8xf32>, vector<20x8xf32> -> vector<20x8xf32>
    %51 = arith.addf %46, %50 : vector<20x8xf32>
    %c0_53 = arith.constant 0 : index
    %c0_54 = arith.constant 0 : index
    %52 = vector.load %arg5[%c0_53, %c0_54] : memref<1x8xf32, #tpu.memory_space<vmem>>, vector<1x8xf32>
    %53 = vector.broadcast %52 : vector<1x8xf32> to vector<20x8xf32>
    %54 = arith.addf %51, %53 : vector<20x8xf32>
    %55 = arith.negf %54 : vector<20x8xf32>
    %56 = math.exp %55 : vector<20x8xf32>
    %cst_55 = arith.constant 1.000000e+00 : f32
    %57 = vector.broadcast %cst_55 : f32 to vector<20x8xf32>
    %58 = arith.addf %57, %56 : vector<20x8xf32>
    %59 = arith.divf %57, %58 : vector<20x8xf32>
    %60 = arith.mulf %54, %59 : vector<20x8xf32>
    %c0_56 = arith.constant 0 : index
    %c0_57 = arith.constant 0 : index
    %61 = vector.load %arg1[%c0_56, %c0_57] : memref<16x4xf32, #tpu.memory_space<vmem>>, vector<16x4xf32>
    %c0_58 = arith.constant 0 : index
    %c0_59 = arith.constant 0 : index
    %62 = vector.load %arg6[%c0_58, %c0_59] : memref<4x8xf32, #tpu.memory_space<vmem>>, vector<4x8xf32>
    %cst_60 = arith.constant dense<0.000000e+00> : vector<16x8xf32>
    %63 = tpu.matmul %61, %62, %cst_60 {dimension_numbers = #tpu.dot_dimension_numbers<[1], [0], [0], [1], [0, 0, 1, 1], [], []>} : vector<16x4xf32>, vector<4x8xf32>, vector<16x8xf32> -> vector<16x8xf32>
    %c0_61 = arith.constant 0 : index
    %c0_62 = arith.constant 0 : index
    %64 = vector.load %arg7[%c0_61, %c0_62] : memref<1x8xf32, #tpu.memory_space<vmem>>, vector<1x8xf32>
    %65 = vector.broadcast %64 : vector<1x8xf32> to vector<16x8xf32>
    %66 = arith.addf %63, %65 : vector<16x8xf32>
    %67 = vector.extract_strided_slice %60 {offsets = [4, 0], sizes = [16, 8], strides = [1, 1]} : vector<20x8xf32> to vector<16x8xf32>
    %68 = arith.addf %67, %66 : vector<16x8xf32>
    %69 = arith.negf %68 : vector<16x8xf32>
    %70 = math.exp %69 : vector<16x8xf32>
    %cst_63 = arith.constant 1.000000e+00 : f32
    %71 = vector.broadcast %cst_63 : f32 to vector<16x8xf32>
    %72 = arith.addf %71, %70 : vector<16x8xf32>
    %73 = arith.divf %71, %72 : vector<16x8xf32>
    %74 = arith.mulf %68, %73 : vector<16x8xf32>
    %c0_64 = arith.constant 0 : index
    %c0_65 = arith.constant 0 : index
    %75 = vector.load %arg8[%c0_64, %c0_65] : memref<16x8xf32, #tpu.memory_space<vmem>>, vector<16x8xf32>
    tpu.vector_store %arg8[%c0_64, %c0_65], %74 {strides = array<i32>} : memref<16x8xf32, #tpu.memory_space<vmem>>, vector<16x8xf32>,
    return
  }
  func.func @transform_0(%arg0: i32) -> (i32, i32) {
    %c0_i32 = arith.constant 0 : i32
    %c0_i32_0 = arith.constant 0 : i32
    return %arg0, %c0_i32 : i32, i32
  }
  func.func @transform_1(%arg0: i32) -> (i32, i32, i32) {
    %c0_i32 = arith.constant 0 : i32
    %c0_i32_0 = arith.constant 0 : i32
    %c0_i32_1 = arith.constant 0 : i32
    %c0_i32_2 = arith.constant 0 : i32
    return %c0_i32, %c0_i32_0, %c0_i32_1 : i32, i32, i32
  }
  func.func @transform_2(%arg0: i32) -> (i32, i32) {
    %c0_i32 = arith.constant 0 : i32
    %c0_i32_0 = arith.constant 0 : i32
    %c0_i32_1 = arith.constant 0 : i32
    return %c0_i32, %c0_i32_0 : i32, i32
  }
  func.func @transform_3(%arg0: i32) -> (i32, i32, i32) {
    %c0_i32 = arith.constant 0 : i32
    %c0_i32_0 = arith.constant 0 : i32
    %c0_i32_1 = arith.constant 0 : i32
    %c0_i32_2 = arith.constant 0 : i32
    return %c0_i32, %c0_i32_0, %c0_i32_1 : i32, i32, i32
  }
  func.func @transform_4(%arg0: i32) -> (i32, i32) {
    %c0_i32 = arith.constant 0 : i32
    %c0_i32_0 = arith.constant 0 : i32
    %c0_i32_1 = arith.constant 0 : i32
    return %c0_i32, %c0_i32_0 : i32, i32
  }
  func.func @transform_5(%arg0: i32) -> (i32, i32) {
    %c0_i32 = arith.constant 0 : i32
    %c0_i32_0 = arith.constant 0 : i32
    %c0_i32_1 = arith.constant 0 : i32
    return %c0_i32, %c0_i32_0 : i32, i32
  }
  func.func @transform_6(%arg0: i32) -> (i32, i32) {
    %c0_i32 = arith.constant 0 : i32
    %c0_i32_0 = arith.constant 0 : i32
    %c0_i32_1 = arith.constant 0 : i32
    return %c0_i32, %c0_i32_0 : i32, i32
  }
  func.func @transform_7(%arg0: i32) -> (i32, i32) {
    %c0_i32 = arith.constant 0 : i32
    %c0_i32_0 = arith.constant 0 : i32
    return %arg0, %c0_i32 : i32, i32
  }
}

</mosaic_0001>

<llo_original>
// kernel: tpu_custom_call.1
$region0: #{tpu_custom_call.1}
  #allocation0 [shape = 'u32[]', space=smem, size = 0x4, offset = 0x4, fixed_abs, tag = 'smem constant byte address 0x4 - core index']
  #allocation1 [shape = 'u32[144,128]{1,0:T(1,128)}', space=vmem, size = 0x12000, scoped, tag = 'internal scratch']
  #allocation2 [shape = 'f32[24,4]{1,0:T(8,128)}', space=vmem, size = 0x3000, scoped, tag = 'scratch operand']
  #allocation3 [shape = 'f32[24,8]{1,0:T(8,128)}', space=vmem, size = 0x3000, scoped, tag = 'scratch operand']
  %s0 = inlined_call_operand.vmem [shape: f32[32,4], index: 0, kind: input, shape index: {}]
  %s1 = inlined_call_operand.vmem [shape: f32[3,4,8], index: 1, kind: input, shape index: {}]
  %s2 = inlined_call_operand.vmem [shape: f32[1,8], index: 2, kind: input, shape index: {}]
  %s3 = inlined_call_operand.vmem [shape: f32[3,8,8], index: 3, kind: input, shape index: {}]
  %s4 = inlined_call_operand.vmem [shape: f32[1,8], index: 4, kind: input, shape index: {}]
  %s5 = inlined_call_operand.vmem [shape: f32[4,8], index: 5, kind: input, shape index: {}]
  %s6 = inlined_call_operand.vmem [shape: f32[1,8], index: 6, kind: input, shape index: {}]
  %s7 = inlined_call_operand.vmem [shape: f32[32,8], index: 7, kind: output, shape index: {}]
  %s8 = sld [smem:[#allocation0]]
  $region61: #{tpu_custom_call.1} parent=0
    _
  %s10 = ssub.s32 1, %s8
  %s11 = scalar_select 0, %s10, %s8
  loop: start=0, step=1, limit=4
  $region2: #{tpu_custom_call.1} parent=0 // loop_pre_header
    _
  $region3: #{tpu_custom_call.1} parent=0 // loop_header
    %s13 = sphi 0, %s17
    %p14 = scmp.ge.s32.totalorder %s13, 4
    %s23 = sphi 0, %s25
    %s26 = sphi 0, %s23
    %s27 = sphi 0, %s26
    %s43 = sphi 0, %s27
    %s47 = sphi 0, %s47
    %s49 = sphi 0, %s47
    %s50 = sphi 0, %s49
    %s64 = sphi 0, %s50
    %s68 = sphi 0, %s68
    %s70 = sphi 0, %s68
    %s71 = sphi 0, %s70
    %s85 = sphi 0, %s71
    %s89 = sphi 0, %s89
    %s91 = sphi 0, %s89
    %s92 = sphi 0, %s91
    %s106 = sphi 0, %s92
    %s110 = sphi 0, %s110
    %s112 = sphi 0, %s110
    %s113 = sphi 0, %s112
    %s127 = sphi 0, %s113
    %s131 = sphi 0, %s131
    %s133 = sphi 0, %s131
    %s134 = sphi 0, %s133
    %s148 = sphi 0, %s134
    %s152 = sphi 0, %s152
    %s154 = sphi 0, %s152
    %s155 = sphi 0, %s154
    %s169 = sphi 0, %s155
    %s175 = sphi 0, %s177
    %s178 = sphi 0, %s175
    %s179 = sphi 0, %s178
    %s195 = sphi 0, %s179
  $region4: #{tpu_custom_call.1} parent=0 // loop_header_branch
    %16 = sbr.rel (%p14) target = $region8
  $region5: #{tpu_custom_call.1} parent=0 // loop_body
    %s18 = ssub.s32 %s13, 1
    %s19 = ssub.s32 %s13, 2
    %s20 = sadd.s32 %s13, 1
    %s21 = ssub.s32 %s13, %s20
    %p22 = scmp.eq.s32.totalorder %s21, 0
    %s24 = sadd.s32 %s23, 1
    %s25 = scalar_select %p22, %s23, %s24
    %p28 = pneg %p22
    %p29 = scmp.eq.s32.totalorder %s13, 1
    %p30 = por %p28, %p29
    %p31 = scmp.ne.s32.totalorder %s23, %s26
    %p32 = scmp.eq.s32.totalorder %s13, 0
    %p33 = por %p31, %p32
    %p34 = scmp.ne.s32.totalorder %s23, %s26
    %p35 = scmp.eq.s32.totalorder %s18, 1
    %p36 = por %p34, %p35
    %p37 = scmp.ne.s32.totalorder %s26, %s27
    %p38 = scmp.eq.s32.totalorder %s18, 0
    %p39 = por %p37, %p38
    %p40 = scmp.ne.s32.totalorder %s26, %s27
    %p41 = scmp.eq.s32.totalorder %s19, 1
    %p42 = por %p40, %p41
    %p44 = scmp.ne.s32.totalorder %s27, %s43
    %p45 = scmp.eq.s32.totalorder %s19, 0
    %p46 = por %p44, %p45
    %s48 = sadd.s32 %s47, 1
    %p51 = scmp.eq.s32.totalorder %s13, 1
    %p52 = scmp.ne.s32.totalorder %s47, %s49
    %p53 = scmp.eq.s32.totalorder %s13, 0
    %p54 = por %p52, %p53
    %p55 = scmp.ne.s32.totalorder %s47, %s49
    %p56 = scmp.eq.s32.totalorder %s18, 1
    %p57 = por %p55, %p56
    %p58 = scmp.ne.s32.totalorder %s49, %s50
    %p59 = scmp.eq.s32.totalorder %s18, 0
    %p60 = por %p58, %p59
    %p61 = scmp.ne.s32.totalorder %s49, %s50
    %p62 = scmp.eq.s32.totalorder %s19, 1
    %p63 = por %p61, %p62
    %p65 = scmp.ne.s32.totalorder %s50, %s64
    %p66 = scmp.eq.s32.totalorder %s19, 0
    %p67 = por %p65, %p66
    %s69 = sadd.s32 %s68, 1
    %p72 = scmp.eq.s32.totalorder %s13, 1
    %p73 = scmp.ne.s32.totalorder %s68, %s70
    %p74 = scmp.eq.s32.totalorder %s13, 0
    %p75 = por %p73, %p74
    %p76 = scmp.ne.s32.totalorder %s68, %s70
    %p77 = scmp.eq.s32.totalorder %s18, 1
    %p78 = por %p76, %p77
    %p79 = scmp.ne.s32.totalorder %s70, %s71
    %p80 = scmp.eq.s32.totalorder %s18, 0
    %p81 = por %p79, %p80
    %p82 = scmp.ne.s32.totalorder %s70, %s71
    %p83 = scmp.eq.s32.totalorder %s19, 1
    %p84 = por %p82, %p83
    %p86 = scmp.ne.s32.totalorder %s71, %s85
    %p87 = scmp.eq.s32.totalorder %s19, 0
    %p88 = por %p86, %p87
    %s90 = sadd.s32 %s89, 1
    %p93 = scmp.eq.s32.totalorder %s13, 1
    %p94 = scmp.ne.s32.totalorder %s89, %s91
    %p95 = scmp.eq.s32.totalorder %s13, 0
    %p96 = por %p94, %p95
    %p97 = scmp.ne.s32.totalorder %s89, %s91
    %p98 = scmp.eq.s32.totalorder %s18, 1
    %p99 = por %p97, %p98
    %p100 = scmp.ne.s32.totalorder %s91, %s92
    %p101 = scmp.eq.s32.totalorder %s18, 0
    %p102 = por %p100, %p101
    %p103 = scmp.ne.s32.totalorder %s91, %s92
    %p104 = scmp.eq.s32.totalorder %s19, 1
    %p105 = por %p103, %p104
    %p107 = scmp.ne.s32.totalorder %s92, %s106
    %p108 = scmp.eq.s32.totalorder %s19, 0
    %p109 = por %p107, %p108
    %s111 = sadd.s32 %s110, 1
    %p114 = scmp.eq.s32.totalorder %s13, 1
    %p115 = scmp.ne.s32.totalorder %s110, %s112
    %p116 = scmp.eq.s32.totalorder %s13, 0
    %p117 = por %p115, %p116
    %p118 = scmp.ne.s32.totalorder %s110, %s112
    %p119 = scmp.eq.s32.totalorder %s18, 1
    %p120 = por %p118, %p119
    %p121 = scmp.ne.s32.totalorder %s112, %s113
    %p122 = scmp.eq.s32.totalorder %s18, 0
    %p123 = por %p121, %p122
    %p124 = scmp.ne.s32.totalorder %s112, %s113
    %p125 = scmp.eq.s32.totalorder %s19, 1
    %p126 = por %p124, %p125
    %p128 = scmp.ne.s32.totalorder %s113, %s127
    %p129 = scmp.eq.s32.totalorder %s19, 0
    %p130 = por %p128, %p129
    %s132 = sadd.s32 %s131, 1
    %p135 = scmp.eq.s32.totalorder %s13, 1
    %p136 = scmp.ne.s32.totalorder %s131, %s133
    %p137 = scmp.eq.s32.totalorder %s13, 0
    %p138 = por %p136, %p137
    %p139 = scmp.ne.s32.totalorder %s131, %s133
    %p140 = scmp.eq.s32.totalorder %s18, 1
    %p141 = por %p139, %p140
    %p142 = scmp.ne.s32.totalorder %s133, %s134
    %p143 = scmp.eq.s32.totalorder %s18, 0
    %p144 = por %p142, %p143
    %p145 = scmp.ne.s32.totalorder %s133, %s134
    %p146 = scmp.eq.s32.totalorder %s19, 1
    %p147 = por %p145, %p146
    %p149 = scmp.ne.s32.totalorder %s134, %s148
    %p150 = scmp.eq.s32.totalorder %s19, 0
    %p151 = por %p149, %p150
    %s153 = sadd.s32 %s152, 1
    %p156 = scmp.eq.s32.totalorder %s13, 1
    %p157 = scmp.ne.s32.totalorder %s152, %s154
    %p158 = scmp.eq.s32.totalorder %s13, 0
    %p159 = por %p157, %p158
    %p160 = scmp.ne.s32.totalorder %s152, %s154
    %p161 = scmp.eq.s32.totalorder %s18, 1
    %p162 = por %p160, %p161
    %p163 = scmp.ne.s32.totalorder %s154, %s155
    %p164 = scmp.eq.s32.totalorder %s18, 0
    %p165 = por %p163, %p164
    %p166 = scmp.ne.s32.totalorder %s154, %s155
    %p167 = scmp.eq.s32.totalorder %s19, 1
    %p168 = por %p166, %p167
    %p170 = scmp.ne.s32.totalorder %s155, %s169
    %p171 = scmp.eq.s32.totalorder %s19, 0
    %p172 = por %p170, %p171
    %s173 = ssub.s32 %s13, %s20
    %p174 = scmp.eq.s32.totalorder %s173, 0
    %s176 = sadd.s32 %s175, 1
    %s177 = scalar_select %p174, %s175, %s176
    %p180 = pneg %p174
    %p181 = scmp.eq.s32.totalorder %s13, 1
    %p182 = por %p180, %p181
    %p183 = scmp.ne.s32.totalorder %s175, %s178
    %p184 = scmp.eq.s32.totalorder %s13, 0
    %p185 = por %p183, %p184
    %p186 = scmp.ne.s32.totalorder %s175, %s178
    %p187 = scmp.eq.s32.totalorder %s18, 1
    %p188 = por %p186, %p187
    %p189 = scmp.ne.s32.totalorder %s178, %s179
    %p190 = scmp.eq.s32.totalorder %s18, 0
    %p191 = por %p189, %p190
    %p192 = scmp.ne.s32.totalorder %s178, %s179
    %p193 = scmp.eq.s32.totalorder %s19, 1
    %p194 = por %p192, %p193
    %p196 = scmp.ne.s32.totalorder %s179, %s195
    %p197 = scmp.eq.s32.totalorder %s19, 0
    %p198 = por %p196, %p197
    %p199 = scmp.le.s32.totalorder 1, %s13
    %p200 = scmp.lt.s32.totalorder %s13, 3
    %p201 = pnand %p199, %p200
    %p202 = pneg %p201
    // Predicated region
    $region9: #{tpu_custom_call.1} parent=5 // pred_check
      _
    $region10: #{tpu_custom_call.1} parent=5 // pred_check_branch
      %204 = sbr.rel (%p201) target = $region12
    $region11: #{tpu_custom_call.1} parent=5 // pred_region
      %s205 = ssub.s32 %s13, 1
      // Predicated region
      $region13: #{tpu_custom_call.1} parent=11 // pred_check
        %p206 = pneg %p60
      $region14: #{tpu_custom_call.1} parent=11 // pred_check_branch
        %208 = sbr.rel (%p206) target = $region16
      $region15: #{tpu_custom_call.1} parent=11 // pred_region
        _
      $region16: #{tpu_custom_call.1} parent=11 // pred_fallthru
        _
      // Predicated region
      $region17: #{tpu_custom_call.1} parent=11 // pred_check
        %p209 = pneg %p81
      $region18: #{tpu_custom_call.1} parent=11 // pred_check_branch
        %211 = sbr.rel (%p209) target = $region20
      $region19: #{tpu_custom_call.1} parent=11 // pred_region
        _
      $region20: #{tpu_custom_call.1} parent=11 // pred_fallthru
        _
      // Predicated region
      $region21: #{tpu_custom_call.1} parent=11 // pred_check
        %p212 = pneg %p102
      $region22: #{tpu_custom_call.1} parent=11 // pred_check_branch
        %214 = sbr.rel (%p212) target = $region24
      $region23: #{tpu_custom_call.1} parent=11 // pred_region
        _
      $region24: #{tpu_custom_call.1} parent=11 // pred_fallthru
        _
      // Predicated region
      $region25: #{tpu_custom_call.1} parent=11 // pred_check
        %p215 = pneg %p123
      $region26: #{tpu_custom_call.1} parent=11 // pred_check_branch
        %217 = sbr.rel (%p215) target = $region28
      $region27: #{tpu_custom_call.1} parent=11 // pred_region
        _
      $region28: #{tpu_custom_call.1} parent=11 // pred_fallthru
        _
      // Predicated region
      $region29: #{tpu_custom_call.1} parent=11 // pred_check
        %p218 = pneg %p144
      $region30: #{tpu_custom_call.1} parent=11 // pred_check_branch
        %220 = sbr.rel (%p218) target = $region32
      $region31: #{tpu_custom_call.1} parent=11 // pred_region
        _
      $region32: #{tpu_custom_call.1} parent=11 // pred_fallthru
        _
      // Predicated region
      $region33: #{tpu_custom_call.1} parent=11 // pred_check
        %p221 = pneg %p165
      $region34: #{tpu_custom_call.1} parent=11 // pred_check_branch
        %223 = sbr.rel (%p221) target = $region36
      $region35: #{tpu_custom_call.1} parent=11 // pred_region
        _
      $region36: #{tpu_custom_call.1} parent=11 // pred_fallthru
        _
    $region12: #{tpu_custom_call.1} parent=5 // pred_fallthru
      _
    %p224 = scmp.lt.s32.totalorder %s13, 2
    // Predicated region
    $region37: #{tpu_custom_call.1} parent=5 // pred_check
      %p225 = pneg %p224
    $region38: #{tpu_custom_call.1} parent=5 // pred_check_branch
      %227 = sbr.rel (%p225) target = $region40
    $region39: #{tpu_custom_call.1} parent=5 // pred_region
      // Predicated region
      $region41: #{tpu_custom_call.1} parent=39 // pred_check
        %p228 = pneg %p33
      $region42: #{tpu_custom_call.1} parent=39 // pred_check_branch
        %230 = sbr.rel (%p228) target = $region44
      $region43: #{tpu_custom_call.1} parent=39 // pred_region
        %s231 = smul.u32 2, %s13
        %p232 = scmp.lt.s32.totalorder %s231, 3
        %s233 = scalar_select %p232, %s231, 3
        %s234 = smul.addr %s233, 8
        %s235 = scalar_lea.vmem %s0, %s234
        %s236 = smul.u32 2, %s13
      $region44: #{tpu_custom_call.1} parent=39 // pred_fallthru
        _
    $region40: #{tpu_custom_call.1} parent=5 // pred_fallthru
      _
    %p237 = scmp.le.s32.totalorder 1, %s13
    %p238 = scmp.lt.s32.totalorder %s13, 3
    %p239 = pnand %p237, %p238
    %p240 = pneg %p239
    // Predicated region
    $region45: #{tpu_custom_call.1} parent=5 // pred_check
      _
    $region46: #{tpu_custom_call.1} parent=5 // pred_check_branch
      %242 = sbr.rel (%p239) target = $region48
    $region47: #{tpu_custom_call.1} parent=5 // pred_region
      %s243 = ssub.s32 %s13, 1
      %s244 = smul.u32 2, %s18
      %p245 = scmp.lt.s32.totalorder %s244, 3
      %s246 = scalar_select %p245, %s244, 3
      %s247 = smul.addr %s246, 8
      %s248 = scalar_lea.vmem %s0, %s247
      %p249 = pneg %p39
      %p250 = pneg %p36
      %p251 = pneg %p60
      %p252 = pneg %p57
      %p253 = pneg %p81
      %p254 = pneg %p78
      %p255 = pneg %p102
      %p256 = pneg %p99
      %p257 = pneg %p123
      %p258 = pneg %p120
      %p259 = pneg %p144
      %p260 = pneg %p141
      %p261 = pneg %p165
      %p262 = pneg %p162
      %p263 = pneg %p191
      %p264 = pneg %p188
      %s265 = smul.u32 2, %s18
      %p266 = scmp.lt.s32.totalorder %s265, 3
      %s267 = scalar_select %p266, %s265, 3
      %s268 = smul.addr %s267, 8
      %s269 = scalar_lea.vmem %s7, %s268
      %s270 = smul.u32 2, %s18
      %p271 = scmp.lt.s32.totalorder %s270, 3
      %s272 = scalar_select %p271, %s270, 3
      %s273 = smul.addr %s272, 8
      %s274 = scalar_lea.vmem %s0, %s273
      %s275 = smul.u32 2, %s18
      %s276 = smul.u32 2, %s18
      %p277 = scmp.lt.s32.totalorder %s276, 3
      %s278 = scalar_select %p277, %s276, 3
      %s279 = smul.addr %s278, 8
      %s280 = scalar_lea.vmem %s7, %s279
      %s281 = smul.u32 2, %s18
      %vm282 = vcmask 27648
      %283 = vst.msk [vmem:[#allocation2] sm:$0xf] %vm282, 0.0
      %284 = vst.msk [vmem:[#allocation2 + $0x4] sm:$0xf] %vm282, 0.0
      %v285 = vld [vmem:[%s274] sm:$0xff]
      %v286 = vld [vmem:[%s274 + $0x8] sm:$0xff]
      %vm287 = vcmask 31744
      %288 = vst.msk [vmem:[#allocation2 + $0x8] sm:$0xff] %vm287, %v285
      %289 = vst.msk [vmem:[#allocation2 + $0x10] sm:$0xff] %vm287, %v286
      %v290 = vld [vmem:[#allocation2] sm:$0xff]
      %v291 = vld [vmem:[#allocation2 + $0x8] sm:$0xff]
      %v292 = vld [vmem:[#allocation2 + $0x10] sm:$0xf]
      %v293 = vld [vmem:[%s1] sm:$0xf]
      %v294 = vld [vmem:[#allocation2 + $0x2] sm:$0xff]
      %v295 = vld [vmem:[#allocation2 + $0xa] sm:$0xff]
      %v296 = vld [vmem:[#allocation2 + $0x12] sm:$0xf]
      %s297 = scalar_lea.vmem %s1, 4
      %v298 = vld [vmem:[%s297] sm:$0xf]
      %v300 = vsel %vm287, %v294, 0
      %v303 = vsel %vm287, %v295, 0
      %v306 = vsel %vm287, %v296, 0
      %vm308 = vcmask 1043456
      %v310 = vsel %vm308, %v298, 0
      %312 = vmatprep.subr.mxu0 0.0
      %313 = vmatpush1.msra.mxu0 0.0
      %314 = vmatprep.subr.mxu0 0.0
      %315 = vmatpush1.msra.mxu0 0.0
      %316 = vmatprep.subr.mxu0 0.0
      %317 = vmatpush1.msra.mxu0 0.0
      %318 = vmatprep.subr.mxu0 0.0
      %319 = vmatpush1.msra.mxu0 0.0
      %320 = vmatprep.subr.mxu0 0.0
      %321 = vmatpush1.msra.mxu0 0.0
      %322 = vmatprep.subr.mxu0 0.0
      %323 = vmatpush1.msra.mxu0 0.0
      %324 = vmatprep.subr.mxu0 0.0
      %325 = vmatpush1.msra.mxu0 0.0
      %326 = vmatprep.subr.mxu0 0.0
      %327 = vmatpush1.msra.mxu0 0.0
      %328 = vmatprep.subr.mxu0 0.0
      %329 = vmatpush1.msra.mxu0 0.0
      %330 = vmatprep.subr.mxu0 0.0
      %331 = vmatpush1.msra.mxu0 0.0
      %332 = vmatprep.subr.mxu0 0.0
      %333 = vmatpush1.msra.mxu0 0.0
      %334 = vmatprep.subr.mxu0 0.0
      %335 = vmatpush1.msra.mxu0 0.0
      %336 = vmatprep.subr.mxu0 0.0
      %337 = vmatpush1.msra.mxu0 0.0
      %338 = vmatprep.subr.mxu0 0.0
      %339 = vmatpush1.msra.mxu0 0.0
      %340 = vmatprep.subr.mxu0 0.0
      %341 = vmatpush1.msra.mxu0 0.0
      %342 = vmatprep.subr.mxu0 0.0
      %343 = vmatpush1.msra.mxu0 %v310
      %344 = vmatprep.subr.mxu0 0.0
      %345 = vmatpush2.msra.mxu0 0.0
      %346 = vmatprep.subr.mxu0 0.0
      %347 = vmatpush2.msra.mxu0 0.0
      %348 = vmatprep.subr.mxu0 0.0
      %349 = vmatpush2.msra.mxu0 0.0
      %350 = vmatprep.subr.mxu0 0.0
      %351 = vmatpush2.msra.mxu0 0.0
      %352 = vmatprep.subr.mxu0 0.0
      %353 = vmatpush2.msra.mxu0 0.0
      %354 = vmatprep.subr.mxu0 0.0
      %355 = vmatpush2.msra.mxu0 0.0
      %356 = vmatprep.subr.mxu0 0.0
      %357 = vmatpush2.msra.mxu0 0.0
      %358 = vmatprep.subr.mxu0 0.0
      %359 = vmatpush2.msra.mxu0 0.0
      %360 = vmatprep.subr.mxu0 0.0
      %361 = vmatpush2.msra.mxu0 0.0
      %362 = vmatprep.subr.mxu0 0.0
      %363 = vmatpush2.msra.mxu0 0.0
      %364 = vmatprep.subr.mxu0 0.0
      %365 = vmatpush2.msra.mxu0 0.0
      %366 = vmatprep.subr.mxu0 0.0
      %367 = vmatpush2.msra.mxu0 0.0
      %368 = vmatprep.subr.mxu0 0.0
      %369 = vmatpush2.msra.mxu0 0.0
      %370 = vmatprep.subr.mxu0 0.0
      %371 = vmatpush2.msra.mxu0 0.0
      %372 = vmatprep.subr.mxu0 0.0
      %373 = vmatpush2.msra.mxu0 0.0
      %374 = vmatprep.subr.mxu0 0.0
      %375 = vmatpush2.msra.mxu0 0.0
      %376 = vmatprep.mubr.f32.mxu0 0.0
      %377 = vmatmul.mubr.f32.gmra.mxu0 %v300
      %v378 = vpop.f32.mrf.mxu0
      %v379 = vadd.f32 0.0, %v378
      %v380 = vpop.f32.mrf.mxu0
      %381 = vmatprep.mubr.f32.mxu0 0.0
      %382 = vmatmul.mubr.f32.gmra.mxu0 %v303
      %v383 = vpop.f32.mrf.mxu0
      %v384 = vadd.f32 0.0, %v383
      %v385 = vpop.f32.mrf.mxu0
      %386 = vmatprep.mubr.f32.mxu0 0.0
      %387 = vmatmul.mubr.f32.gmra.mxu0 %v306
      %v388 = vpop.f32.mrf.mxu0
      %v389 = vadd.f32 0.0, %v388
      %v390 = vpop.f32.mrf.mxu0
      %391 = vdwg.mxu0
      %v393 = vsel %vm287, %v290, 0
      %v396 = vsel %vm287, %v291, 0
      %v399 = vsel %vm287, %v292, 0
      %v402 = vsel %vm308, %v293, 0
      %404 = vmatprep.subr.mxu0 0.0
      %405 = vmatpush1.msra.mxu0 0.0
      %406 = vmatprep.subr.mxu0 0.0
      %407 = vmatpush1.msra.mxu0 0.0
      %408 = vmatprep.subr.mxu0 0.0
      %409 = vmatpush1.msra.mxu0 0.0
      %410 = vmatprep.subr.mxu0 0.0
      %411 = vmatpush1.msra.mxu0 0.0
      %412 = vmatprep.subr.mxu0 0.0
      %413 = vmatpush1.msra.mxu0 0.0
      %414 = vmatprep.subr.mxu0 0.0
      %415 = vmatpush1.msra.mxu0 0.0
      %416 = vmatprep.subr.mxu0 0.0
      %417 = vmatpush1.msra.mxu0 0.0
      %418 = vmatprep.subr.mxu0 0.0
      %419 = vmatpush1.msra.mxu0 0.0
      %420 = vmatprep.subr.mxu0 0.0
      %421 = vmatpush1.msra.mxu0 0.0
      %422 = vmatprep.subr.mxu0 0.0
      %423 = vmatpush1.msra.mxu0 0.0
      %424 = vmatprep.subr.mxu0 0.0
      %425 = vmatpush1.msra.mxu0 0.0
      %426 = vmatprep.subr.mxu0 0.0
      %427 = vmatpush1.msra.mxu0 0.0
      %428 = vmatprep.subr.mxu0 0.0
      %429 = vmatpush1.msra.mxu0 0.0
      %430 = vmatprep.subr.mxu0 0.0
      %431 = vmatpush1.msra.mxu0 0.0
      %432 = vmatprep.subr.mxu0 0.0
      %433 = vmatpush1.msra.mxu0 0.0
      %434 = vmatprep.subr.mxu0 0.0
      %435 = vmatpush1.msra.mxu0 %v402
      %436 = vmatprep.subr.mxu0 0.0
      %437 = vmatpush2.msra.mxu0 0.0
      %438 = vmatprep.subr.mxu0 0.0
      %439 = vmatpush2.msra.mxu0 0.0
      %440 = vmatprep.subr.mxu0 0.0
      %441 = vmatpush2.msra.mxu0 0.0
      %442 = vmatprep.subr.mxu0 0.0
      %443 = vmatpush2.msra.mxu0 0.0
      %444 = vmatprep.subr.mxu0 0.0
      %445 = vmatpush2.msra.mxu0 0.0
      %446 = vmatprep.subr.mxu0 0.0
      %447 = vmatpush2.msra.mxu0 0.0
      %448 = vmatprep.subr.mxu0 0.0
      %449 = vmatpush2.msra.mxu0 0.0
      %450 = vmatprep.subr.mxu0 0.0
      %451 = vmatpush2.msra.mxu0 0.0
      %452 = vmatprep.subr.mxu0 0.0
      %453 = vmatpush2.msra.mxu0 0.0
      %454 = vmatprep.subr.mxu0 0.0
      %455 = vmatpush2.msra.mxu0 0.0
      %456 = vmatprep.subr.mxu0 0.0
      %457 = vmatpush2.msra.mxu0 0.0
      %458 = vmatprep.subr.mxu0 0.0
      %459 = vmatpush2.msra.mxu0 0.0
      %460 = vmatprep.subr.mxu0 0.0
      %461 = vmatpush2.msra.mxu0 0.0
      %462 = vmatprep.subr.mxu0 0.0
      %463 = vmatpush2.msra.mxu0 0.0
      %464 = vmatprep.subr.mxu0 0.0
      %465 = vmatpush2.msra.mxu0 0.0
      %466 = vmatprep.subr.mxu0 0.0
      %467 = vmatpush2.msra.mxu0 0.0
      %468 = vmatprep.mubr.f32.mxu0 0.0
      %469 = vmatmul.mubr.f32.gmra.mxu0 %v393
      %v470 = vpop.f32.mrf.mxu0
      %v471 = vadd.f32 %v379, %v470
      %v472 = vpop.f32.mrf.mxu0
      %473 = vmatprep.mubr.f32.mxu0 0.0
      %474 = vmatmul.mubr.f32.gmra.mxu0 %v396
      %v475 = vpop.f32.mrf.mxu0
      %v476 = vadd.f32 %v384, %v475
      %v477 = vpop.f32.mrf.mxu0
      %478 = vmatprep.mubr.f32.mxu0 0.0
      %479 = vmatmul.mubr.f32.gmra.mxu0 %v399
      %v480 = vpop.f32.mrf.mxu0
      %v481 = vadd.f32 %v389, %v480
      %v482 = vpop.f32.mrf.mxu0
      %483 = vdwg.mxu0
      %v484 = vld [vmem:[#allocation2 + $0x4] sm:$0xff]
      %v485 = vld [vmem:[#allocation2 + $0xc] sm:$0xff]
      %v486 = vld [vmem:[#allocation2 + $0x14] sm:$0xf]
      %s487 = scalar_lea.vmem %s1, 8
      %v488 = vld [vmem:[%s487] sm:$0xf]
      %v490 = vsel %vm287, %v484, 0
      %v493 = vsel %vm287, %v485, 0
      %v496 = vsel %vm287, %v486, 0
      %v499 = vsel %vm308, %v488, 0
      %501 = vmatprep.subr.mxu0 0.0
      %502 = vmatpush1.msra.mxu0 0.0
      %503 = vmatprep.subr.mxu0 0.0
      %504 = vmatpush1.msra.mxu0 0.0
      %505 = vmatprep.subr.mxu0 0.0
      %506 = vmatpush1.msra.mxu0 0.0
      %507 = vmatprep.subr.mxu0 0.0
      %508 = vmatpush1.msra.mxu0 0.0
      %509 = vmatprep.subr.mxu0 0.0
      %510 = vmatpush1.msra.mxu0 0.0
      %511 = vmatprep.subr.mxu0 0.0
      %512 = vmatpush1.msra.mxu0 0.0
      %513 = vmatprep.subr.mxu0 0.0
      %514 = vmatpush1.msra.mxu0 0.0
      %515 = vmatprep.subr.mxu0 0.0
      %516 = vmatpush1.msra.mxu0 0.0
      %517 = vmatprep.subr.mxu0 0.0
      %518 = vmatpush1.msra.mxu0 0.0
      %519 = vmatprep.subr.mxu0 0.0
      %520 = vmatpush1.msra.mxu0 0.0
      %521 = vmatprep.subr.mxu0 0.0
      %522 = vmatpush1.msra.mxu0 0.0
      %523 = vmatprep.subr.mxu0 0.0
      %524 = vmatpush1.msra.mxu0 0.0
      %525 = vmatprep.subr.mxu0 0.0
      %526 = vmatpush1.msra.mxu0 0.0
      %527 = vmatprep.subr.mxu0 0.0
      %528 = vmatpush1.msra.mxu0 0.0
      %529 = vmatprep.subr.mxu0 0.0
      %530 = vmatpush1.msra.mxu0 0.0
      %531 = vmatprep.subr.mxu0 0.0
      %532 = vmatpush1.msra.mxu0 %v499
      %533 = vmatprep.subr.mxu0 0.0
      %534 = vmatpush2.msra.mxu0 0.0
      %535 = vmatprep.subr.mxu0 0.0
      %536 = vmatpush2.msra.mxu0 0.0
      %537 = vmatprep.subr.mxu0 0.0
      %538 = vmatpush2.msra.mxu0 0.0
      %539 = vmatprep.subr.mxu0 0.0
      %540 = vmatpush2.msra.mxu0 0.0
      %541 = vmatprep.subr.mxu0 0.0
      %542 = vmatpush2.msra.mxu0 0.0
      %543 = vmatprep.subr.mxu0 0.0
      %544 = vmatpush2.msra.mxu0 0.0
      %545 = vmatprep.subr.mxu0 0.0
      %546 = vmatpush2.msra.mxu0 0.0
      %547 = vmatprep.subr.mxu0 0.0
      %548 = vmatpush2.msra.mxu0 0.0
      %549 = vmatprep.subr.mxu0 0.0
      %550 = vmatpush2.msra.mxu0 0.0
      %551 = vmatprep.subr.mxu0 0.0
      %552 = vmatpush2.msra.mxu0 0.0
      %553 = vmatprep.subr.mxu0 0.0
      %554 = vmatpush2.msra.mxu0 0.0
      %555 = vmatprep.subr.mxu0 0.0
      %556 = vmatpush2.msra.mxu0 0.0
      %557 = vmatprep.subr.mxu0 0.0
      %558 = vmatpush2.msra.mxu0 0.0
      %559 = vmatprep.subr.mxu0 0.0
      %560 = vmatpush2.msra.mxu0 0.0
      %561 = vmatprep.subr.mxu0 0.0
      %562 = vmatpush2.msra.mxu0 0.0
      %563 = vmatprep.subr.mxu0 0.0
      %564 = vmatpush2.msra.mxu0 0.0
      %565 = vmatprep.mubr.f32.mxu0 0.0
      %566 = vmatmul.mubr.f32.gmra.mxu0 %v490
      %v567 = vpop.f32.mrf.mxu0
      %v568 = vadd.f32 0.0, %v567
      %v569 = vpop.f32.mrf.mxu0
      %570 = vmatprep.mubr.f32.mxu0 0.0
      %571 = vmatmul.mubr.f32.gmra.mxu0 %v493
      %v572 = vpop.f32.mrf.mxu0
      %v573 = vadd.f32 0.0, %v572
      %v574 = vpop.f32.mrf.mxu0
      %575 = vmatprep.mubr.f32.mxu0 0.0
      %576 = vmatmul.mubr.f32.gmra.mxu0 %v496
      %v577 = vpop.f32.mrf.mxu0
      %v578 = vadd.f32 0.0, %v577
      %v579 = vpop.f32.mrf.mxu0
      %580 = vdwg.mxu0
      %v581 = vadd.f32 %v471, %v568
      %v582 = vadd.f32 %v476, %v573
      %v583 = vadd.f32 %v481, %v578
      %v584 = vld [vmem:[%s2] sm:$0x1]
      %v586 = vlaneseq
      %v587 = vshrl.u32 %v586, 7
      %v588 = vsub.s32 0, %v587
      %v589 = vrot.slane %v584, %v588
      %v591 = vadd.f32 %v581, %v589
      %v592 = vadd.f32 %v582, %v589
      %v593 = vadd.f32 %v583, %v589
      %v594 = vxor.u32 %v591, 2147483648
      %v595 = vxor.u32 %v592, 2147483648
      %v596 = vxor.u32 %v593, 2147483648
      %v597 = vmul.f32 %v594, 1.442695
      %v598 = vpow.pop %v597
      %v599 = vmul.f32 %v595, 1.442695
      %v600 = vpow.pop %v599
      %v601 = vmul.f32 %v596, 1.442695
      %v602 = vpow.pop %v601
      %v603 = vadd.f32 %v598, 1.0
      %v604 = vadd.f32 %v600, 1.0
      %v605 = vadd.f32 %v602, 1.0
      %v606 = vrcp.pop %v603
      %v607 = vmul.f32 1.0, %v606
      %v608 = vrcp.pop %v604
      %v609 = vmul.f32 1.0, %v608
      %v610 = vrcp.pop %v605
      %v611 = vmul.f32 1.0, %v610
      %v612 = vmul.f32 %v591, %v607
      %v613 = vmul.f32 %v592, %v609
      %v614 = vmul.f32 %v593, %v611
      %vm615 = vcmask 60416
      %616 = vst.msk [vmem:[#allocation3] sm:$0xf] %vm615, 0.0
      %vm617 = vcmask 64512
      %618 = vst.msk [vmem:[#allocation3 + $0x4] sm:$0xff] %vm617, %v612
      %619 = vst.msk [vmem:[#allocation3 + $0xc] sm:$0xff] %vm617, %v613
      %620 = vst.msk [vmem:[#allocation3 + $0x14] sm:$0xf] %vm615, %v614
      %621 = vst.msk [vmem:[#allocation3 + $0x4] sm:$0xf] %vm615, 0.0
      %v622 = vld [vmem:[#allocation3] sm:$0xff]
      %v623 = vld [vmem:[#allocation3 + $0x8] sm:$0xff]
      %v624 = vld [vmem:[#allocation3 + $0x10] sm:$0xf]
      %v625 = vld [vmem:[%s3] sm:$0xff]
      %v626 = vld [vmem:[#allocation3 + $0x2] sm:$0xff]
      %v627 = vld [vmem:[#allocation3 + $0xa] sm:$0xff]
      %v628 = vld [vmem:[#allocation3 + $0x12] sm:$0xf]
      %s629 = scalar_lea.vmem %s3, 8
      %v630 = vld [vmem:[%s629] sm:$0xff]
      %v632 = vsel %vm617, %v626, 0
      %v635 = vsel %vm617, %v627, 0
      %v638 = vsel %vm617, %v628, 0
      %640 = vmatprep.subr.mxu0 0.0
      %641 = vmatpush1.msra.mxu0 0.0
      %642 = vmatprep.subr.mxu0 0.0
      %643 = vmatpush1.msra.mxu0 0.0
      %644 = vmatprep.subr.mxu0 0.0
      %645 = vmatpush1.msra.mxu0 0.0
      %646 = vmatprep.subr.mxu0 0.0
      %647 = vmatpush1.msra.mxu0 0.0
      %648 = vmatprep.subr.mxu0 0.0
      %649 = vmatpush1.msra.mxu0 0.0
      %650 = vmatprep.subr.mxu0 0.0
      %651 = vmatpush1.msra.mxu0 0.0
      %652 = vmatprep.subr.mxu0 0.0
      %653 = vmatpush1.msra.mxu0 0.0
      %654 = vmatprep.subr.mxu0 0.0
      %655 = vmatpush1.msra.mxu0 0.0
      %656 = vmatprep.subr.mxu0 0.0
      %657 = vmatpush1.msra.mxu0 0.0
      %658 = vmatprep.subr.mxu0 0.0
      %659 = vmatpush1.msra.mxu0 0.0
      %660 = vmatprep.subr.mxu0 0.0
      %661 = vmatpush1.msra.mxu0 0.0
      %662 = vmatprep.subr.mxu0 0.0
      %663 = vmatpush1.msra.mxu0 0.0
      %664 = vmatprep.subr.mxu0 0.0
      %665 = vmatpush1.msra.mxu0 0.0
      %666 = vmatprep.subr.mxu0 0.0
      %667 = vmatpush1.msra.mxu0 0.0
      %668 = vmatprep.subr.mxu0 0.0
      %669 = vmatpush1.msra.mxu0 0.0
      %670 = vmatprep.subr.mxu0 0.0
      %671 = vmatpush1.msra.mxu0 %v630
      %672 = vmatprep.subr.mxu0 0.0
      %673 = vmatpush2.msra.mxu0 0.0
      %674 = vmatprep.subr.mxu0 0.0
      %675 = vmatpush2.msra.mxu0 0.0
      %676 = vmatprep.subr.mxu0 0.0
      %677 = vmatpush2.msra.mxu0 0.0
      %678 = vmatprep.subr.mxu0 0.0
      %679 = vmatpush2.msra.mxu0 0.0
      %680 = vmatprep.subr.mxu0 0.0
      %681 = vmatpush2.msra.mxu0 0.0
      %682 = vmatprep.subr.mxu0 0.0
      %683 = vmatpush2.msra.mxu0 0.0
      %684 = vmatprep.subr.mxu0 0.0
      %685 = vmatpush2.msra.mxu0 0.0
      %686 = vmatprep.subr.mxu0 0.0
      %687 = vmatpush2.msra.mxu0 0.0
      %688 = vmatprep.subr.mxu0 0.0
      %689 = vmatpush2.msra.mxu0 0.0
      %690 = vmatprep.subr.mxu0 0.0
      %691 = vmatpush2.msra.mxu0 0.0
      %692 = vmatprep.subr.mxu0 0.0
      %693 = vmatpush2.msra.mxu0 0.0
      %694 = vmatprep.subr.mxu0 0.0
      %695 = vmatpush2.msra.mxu0 0.0
      %696 = vmatprep.subr.mxu0 0.0
      %697 = vmatpush2.msra.mxu0 0.0
      %698 = vmatprep.subr.mxu0 0.0
      %699 = vmatpush2.msra.mxu0 0.0
      %700 = vmatprep.subr.mxu0 0.0
      %701 = vmatpush2.msra.mxu0 0.0
      %702 = vmatprep.subr.mxu0 0.0
      %703 = vmatpush2.msra.mxu0 0.0
      %704 = vmatprep.mubr.f32.mxu0 0.0
      %705 = vmatmul.mubr.f32.gmra.mxu0 %v632
      %v706 = vpop.f32.mrf.mxu0
      %v707 = vadd.f32 0.0, %v706
      %v708 = vpop.f32.mrf.mxu0
      %709 = vmatprep.mubr.f32.mxu0 0.0
      %710 = vmatmul.mubr.f32.gmra.mxu0 %v635
      %v711 = vpop.f32.mrf.mxu0
      %v712 = vadd.f32 0.0, %v711
      %v713 = vpop.f32.mrf.mxu0
      %714 = vmatprep.mubr.f32.mxu0 0.0
      %715 = vmatmul.mubr.f32.gmra.mxu0 %v638
      %v716 = vpop.f32.mrf.mxu0
      %v717 = vadd.f32 0.0, %v716
      %v718 = vpop.f32.mrf.mxu0
      %719 = vdwg.mxu0
      %v721 = vsel %vm617, %v622, 0
      %v724 = vsel %vm617, %v623, 0
      %v727 = vsel %vm617, %v624, 0
      %729 = vmatprep.subr.mxu0 0.0
      %730 = vmatpush1.msra.mxu0 0.0
      %731 = vmatprep.subr.mxu0 0.0
      %732 = vmatpush1.msra.mxu0 0.0
      %733 = vmatprep.subr.mxu0 0.0
      %734 = vmatpush1.msra.mxu0 0.0
      %735 = vmatprep.subr.mxu0 0.0
      %736 = vmatpush1.msra.mxu0 0.0
      %737 = vmatprep.subr.mxu0 0.0
      %738 = vmatpush1.msra.mxu0 0.0
      %739 = vmatprep.subr.mxu0 0.0
      %740 = vmatpush1.msra.mxu0 0.0
      %741 = vmatprep.subr.mxu0 0.0
      %742 = vmatpush1.msra.mxu0 0.0
      %743 = vmatprep.subr.mxu0 0.0
      %744 = vmatpush1.msra.mxu0 0.0
      %745 = vmatprep.subr.mxu0 0.0
      %746 = vmatpush1.msra.mxu0 0.0
      %747 = vmatprep.subr.mxu0 0.0
      %748 = vmatpush1.msra.mxu0 0.0
      %749 = vmatprep.subr.mxu0 0.0
      %750 = vmatpush1.msra.mxu0 0.0
      %751 = vmatprep.subr.mxu0 0.0
      %752 = vmatpush1.msra.mxu0 0.0
      %753 = vmatprep.subr.mxu0 0.0
      %754 = vmatpush1.msra.mxu0 0.0
      %755 = vmatprep.subr.mxu0 0.0
      %756 = vmatpush1.msra.mxu0 0.0
      %757 = vmatprep.subr.mxu0 0.0
      %758 = vmatpush1.msra.mxu0 0.0
      %759 = vmatprep.subr.mxu0 0.0
      %760 = vmatpush1.msra.mxu0 %v625
      %761 = vmatprep.subr.mxu0 0.0
      %762 = vmatpush2.msra.mxu0 0.0
      %763 = vmatprep.subr.mxu0 0.0
      %764 = vmatpush2.msra.mxu0 0.0
      %765 = vmatprep.subr.mxu0 0.0
      %766 = vmatpush2.msra.mxu0 0.0
      %767 = vmatprep.subr.mxu0 0.0
      %768 = vmatpush2.msra.mxu0 0.0
      %769 = vmatprep.subr.mxu0 0.0
      %770 = vmatpush2.msra.mxu0 0.0
      %771 = vmatprep.subr.mxu0 0.0
      %772 = vmatpush2.msra.mxu0 0.0
      %773 = vmatprep.subr.mxu0 0.0
      %774 = vmatpush2.msra.mxu0 0.0
      %775 = vmatprep.subr.mxu0 0.0
      %776 = vmatpush2.msra.mxu0 0.0
      %777 = vmatprep.subr.mxu0 0.0
      %778 = vmatpush2.msra.mxu0 0.0
      %779 = vmatprep.subr.mxu0 0.0
      %780 = vmatpush2.msra.mxu0 0.0
      %781 = vmatprep.subr.mxu0 0.0
      %782 = vmatpush2.msra.mxu0 0.0
      %783 = vmatprep.subr.mxu0 0.0
      %784 = vmatpush2.msra.mxu0 0.0
      %785 = vmatprep.subr.mxu0 0.0
      %786 = vmatpush2.msra.mxu0 0.0
      %787 = vmatprep.subr.mxu0 0.0
      %788 = vmatpush2.msra.mxu0 0.0
      %789 = vmatprep.subr.mxu0 0.0
      %790 = vmatpush2.msra.mxu0 0.0
      %791 = vmatprep.subr.mxu0 0.0
      %792 = vmatpush2.msra.mxu0 0.0
      %793 = vmatprep.mubr.f32.mxu0 0.0
      %794 = vmatmul.mubr.f32.gmra.mxu0 %v721
      %v795 = vpop.f32.mrf.mxu0
      %v796 = vadd.f32 %v707, %v795
      %v797 = vpop.f32.mrf.mxu0
      %798 = vmatprep.mubr.f32.mxu0 0.0
      %799 = vmatmul.mubr.f32.gmra.mxu0 %v724
      %v800 = vpop.f32.mrf.mxu0
      %v801 = vadd.f32 %v712, %v800
      %v802 = vpop.f32.mrf.mxu0
      %803 = vmatprep.mubr.f32.mxu0 0.0
      %804 = vmatmul.mubr.f32.gmra.mxu0 %v727
      %v805 = vpop.f32.mrf.mxu0
      %v806 = vadd.f32 %v717, %v805
      %v807 = vpop.f32.mrf.mxu0
      %808 = vdwg.mxu0
      %v809 = vld [vmem:[#allocation3 + $0x4] sm:$0xff]
      %v810 = vld [vmem:[#allocation3 + $0xc] sm:$0xff]
      %v811 = vld [vmem:[#allocation3 + $0x14] sm:$0xf]
      %s812 = scalar_lea.vmem %s3, 16
      %v813 = vld [vmem:[%s812] sm:$0xff]
      %v815 = vsel %vm617, %v809, 0
      %v818 = vsel %vm617, %v810, 0
      %v821 = vsel %vm617, %v811, 0
      %823 = vmatprep.subr.mxu0 0.0
      %824 = vmatpush1.msra.mxu0 0.0
      %825 = vmatprep.subr.mxu0 0.0
      %826 = vmatpush1.msra.mxu0 0.0
      %827 = vmatprep.subr.mxu0 0.0
      %828 = vmatpush1.msra.mxu0 0.0
      %829 = vmatprep.subr.mxu0 0.0
      %830 = vmatpush1.msra.mxu0 0.0
      %831 = vmatprep.subr.mxu0 0.0
      %832 = vmatpush1.msra.mxu0 0.0
      %833 = vmatprep.subr.mxu0 0.0
      %834 = vmatpush1.msra.mxu0 0.0
      %835 = vmatprep.subr.mxu0 0.0
      %836 = vmatpush1.msra.mxu0 0.0
      %837 = vmatprep.subr.mxu0 0.0
      %838 = vmatpush1.msra.mxu0 0.0
      %839 = vmatprep.subr.mxu0 0.0
      %840 = vmatpush1.msra.mxu0 0.0
      %841 = vmatprep.subr.mxu0 0.0
      %842 = vmatpush1.msra.mxu0 0.0
      %843 = vmatprep.subr.mxu0 0.0
      %844 = vmatpush1.msra.mxu0 0.0
      %845 = vmatprep.subr.mxu0 0.0
      %846 = vmatpush1.msra.mxu0 0.0
      %847 = vmatprep.subr.mxu0 0.0
      %848 = vmatpush1.msra.mxu0 0.0
      %849 = vmatprep.subr.mxu0 0.0
      %850 = vmatpush1.msra.mxu0 0.0
      %851 = vmatprep.subr.mxu0 0.0
      %852 = vmatpush1.msra.mxu0 0.0
      %853 = vmatprep.subr.mxu0 0.0
      %854 = vmatpush1.msra.mxu0 %v813
      %855 = vmatprep.subr.mxu0 0.0
      %856 = vmatpush2.msra.mxu0 0.0
      %857 = vmatprep.subr.mxu0 0.0
      %858 = vmatpush2.msra.mxu0 0.0
      %859 = vmatprep.subr.mxu0 0.0
      %860 = vmatpush2.msra.mxu0 0.0
      %861 = vmatprep.subr.mxu0 0.0
      %862 = vmatpush2.msra.mxu0 0.0
      %863 = vmatprep.subr.mxu0 0.0
      %864 = vmatpush2.msra.mxu0 0.0
      %865 = vmatprep.subr.mxu0 0.0
      %866 = vmatpush2.msra.mxu0 0.0
      %867 = vmatprep.subr.mxu0 0.0
      %868 = vmatpush2.msra.mxu0 0.0
      %869 = vmatprep.subr.mxu0 0.0
      %870 = vmatpush2.msra.mxu0 0.0
      %871 = vmatprep.subr.mxu0 0.0
      %872 = vmatpush2.msra.mxu0 0.0
      %873 = vmatprep.subr.mxu0 0.0
      %874 = vmatpush2.msra.mxu0 0.0
      %875 = vmatprep.subr.mxu0 0.0
      %876 = vmatpush2.msra.mxu0 0.0
      %877 = vmatprep.subr.mxu0 0.0
      %878 = vmatpush2.msra.mxu0 0.0
      %879 = vmatprep.subr.mxu0 0.0
      %880 = vmatpush2.msra.mxu0 0.0
      %881 = vmatprep.subr.mxu0 0.0
      %882 = vmatpush2.msra.mxu0 0.0
      %883 = vmatprep.subr.mxu0 0.0
      %884 = vmatpush2.msra.mxu0 0.0
      %885 = vmatprep.subr.mxu0 0.0
      %886 = vmatpush2.msra.mxu0 0.0
      %887 = vmatprep.mubr.f32.mxu0 0.0
      %888 = vmatmul.mubr.f32.gmra.mxu0 %v815
      %v889 = vpop.f32.mrf.mxu0
      %v890 = vadd.f32 0.0, %v889
      %v891 = vpop.f32.mrf.mxu0
      %892 = vmatprep.mubr.f32.mxu0 0.0
      %893 = vmatmul.mubr.f32.gmra.mxu0 %v818
      %v894 = vpop.f32.mrf.mxu0
      %v895 = vadd.f32 0.0, %v894
      %v896 = vpop.f32.mrf.mxu0
      %897 = vmatprep.mubr.f32.mxu0 0.0
      %898 = vmatmul.mubr.f32.gmra.mxu0 %v821
      %v899 = vpop.f32.mrf.mxu0
      %v900 = vadd.f32 0.0, %v899
      %v901 = vpop.f32.mrf.mxu0
      %902 = vdwg.mxu0
      %v903 = vadd.f32 %v796, %v890
      %v904 = vadd.f32 %v801, %v895
      %v905 = vadd.f32 %v806, %v900
      %v906 = vld [vmem:[%s4] sm:$0x1]
      %v908 = vlaneseq
      %v909 = vshrl.u32 %v908, 7
      %v910 = vsub.s32 0, %v909
      %v911 = vrot.slane %v906, %v910
      %v913 = vadd.f32 %v903, %v911
      %v914 = vadd.f32 %v904, %v911
      %v915 = vadd.f32 %v905, %v911
      %v916 = vxor.u32 %v913, 2147483648
      %v917 = vxor.u32 %v914, 2147483648
      %v918 = vxor.u32 %v915, 2147483648
      %v919 = vmul.f32 %v916, 1.442695
      %v920 = vpow.pop %v919
      %v921 = vmul.f32 %v917, 1.442695
      %v922 = vpow.pop %v921
      %v923 = vmul.f32 %v918, 1.442695
      %v924 = vpow.pop %v923
      %v925 = vadd.f32 %v920, 1.0
      %v926 = vadd.f32 %v922, 1.0
      %v927 = vadd.f32 %v924, 1.0
      %v928 = vrcp.pop %v925
      %v929 = vmul.f32 1.0, %v928
      %v930 = vrcp.pop %v926
      %v931 = vmul.f32 1.0, %v930
      %v932 = vrcp.pop %v927
      %v933 = vmul.f32 1.0, %v932
      %v934 = vmul.f32 %v913, %v929
      %v935 = vmul.f32 %v914, %v931
      %v936 = vmul.f32 %v915, %v933
      %v937 = vld [vmem:[%s274] sm:$0xff]
      %v938 = vld [vmem:[%s274 + $0x8] sm:$0xff]
      %v939 = vld [vmem:[%s5] sm:$0xf]
      %v940 = vld [vmem:[%s6] sm:$0x1]
      %v942 = vlaneseq
      %v943 = vshrl.u32 %v942, 7
      %v944 = vsub.s32 0, %v943
      %v945 = vrot.slane %v940, %v944
      %v948 = vsel %vm287, %v937, 0
      %v951 = vsel %vm287, %v938, 0
      %v954 = vsel %vm308, %v939, 0
      %956 = vmatprep.subr.mxu0 0.0
      %957 = vmatpush1.msra.mxu0 0.0
      %958 = vmatprep.subr.mxu0 0.0
      %959 = vmatpush1.msra.mxu0 0.0
      %960 = vmatprep.subr.mxu0 0.0
      %961 = vmatpush1.msra.mxu0 0.0
      %962 = vmatprep.subr.mxu0 0.0
      %963 = vmatpush1.msra.mxu0 0.0
      %964 = vmatprep.subr.mxu0 0.0
      %965 = vmatpush1.msra.mxu0 0.0
      %966 = vmatprep.subr.mxu0 0.0
      %967 = vmatpush1.msra.mxu0 0.0
      %968 = vmatprep.subr.mxu0 0.0
      %969 = vmatpush1.msra.mxu0 0.0
      %970 = vmatprep.subr.mxu0 0.0
      %971 = vmatpush1.msra.mxu0 0.0
      %972 = vmatprep.subr.mxu0 0.0
      %973 = vmatpush1.msra.mxu0 0.0
      %974 = vmatprep.subr.mxu0 0.0
      %975 = vmatpush1.msra.mxu0 0.0
      %976 = vmatprep.subr.mxu0 0.0
      %977 = vmatpush1.msra.mxu0 0.0
      %978 = vmatprep.subr.mxu0 0.0
      %979 = vmatpush1.msra.mxu0 0.0
      %980 = vmatprep.subr.mxu0 0.0
      %981 = vmatpush1.msra.mxu0 0.0
      %982 = vmatprep.subr.mxu0 0.0
      %983 = vmatpush1.msra.mxu0 0.0
      %984 = vmatprep.subr.mxu0 0.0
      %985 = vmatpush1.msra.mxu0 0.0
      %986 = vmatprep.subr.mxu0 0.0
      %987 = vmatpush1.msra.mxu0 %v954
      %988 = vmatprep.subr.mxu0 0.0
      %989 = vmatpush2.msra.mxu0 0.0
      %990 = vmatprep.subr.mxu0 0.0
      %991 = vmatpush2.msra.mxu0 0.0
      %992 = vmatprep.subr.mxu0 0.0
      %993 = vmatpush2.msra.mxu0 0.0
      %994 = vmatprep.subr.mxu0 0.0
      %995 = vmatpush2.msra.mxu0 0.0
      %996 = vmatprep.subr.mxu0 0.0
      %997 = vmatpush2.msra.mxu0 0.0
      %998 = vmatprep.subr.mxu0 0.0
      %999 = vmatpush2.msra.mxu0 0.0
      %1000 = vmatprep.subr.mxu0 0.0
      %1001 = vmatpush2.msra.mxu0 0.0
      %1002 = vmatprep.subr.mxu0 0.0
      %1003 = vmatpush2.msra.mxu0 0.0
      %1004 = vmatprep.subr.mxu0 0.0
      %1005 = vmatpush2.msra.mxu0 0.0
      %1006 = vmatprep.subr.mxu0 0.0
      %1007 = vmatpush2.msra.mxu0 0.0
      %1008 = vmatprep.subr.mxu0 0.0
      %1009 = vmatpush2.msra.mxu0 0.0
      %1010 = vmatprep.subr.mxu0 0.0
      %1011 = vmatpush2.msra.mxu0 0.0
      %1012 = vmatprep.subr.mxu0 0.0
      %1013 = vmatpush2.msra.mxu0 0.0
      %1014 = vmatprep.subr.mxu0 0.0
      %1015 = vmatpush2.msra.mxu0 0.0
      %1016 = vmatprep.subr.mxu0 0.0
      %1017 = vmatpush2.msra.mxu0 0.0
      %1018 = vmatprep.subr.mxu0 0.0
      %1019 = vmatpush2.msra.mxu0 0.0
      %1020 = vmatprep.mubr.f32.mxu0 0.0
      %1021 = vmatmul.mubr.f32.gmra.mxu0 %v948
      %v1022 = vpop.f32.mrf.mxu0
      %v1023 = vadd.f32 %v945, %v1022
      %v1024 = vpop.f32.mrf.mxu0
      %1025 = vmatprep.mubr.f32.mxu0 0.0
      %1026 = vmatmul.mubr.f32.gmra.mxu0 %v951
      %v1027 = vpop.f32.mrf.mxu0
      %v1028 = vadd.f32 %v945, %v1027
      %v1029 = vpop.f32.mrf.mxu0
      %1030 = vdwg.mxu0
      %v1033 = vrot.slane %v1023, 4
      %v1034 = vrot.slane %v1028, 4
      %v1035 = vsel %vm308, %v1033, %v1034
      %v1039 = vadd.f32 %v934, %v1033
      %v1040 = vadd.f32 %v935, %v1035
      %v1041 = vadd.f32 %v936, %v1034
      %v1042 = vxor.u32 %v1039, 2147483648
      %v1043 = vxor.u32 %v1040, 2147483648
      %v1044 = vxor.u32 %v1041, 2147483648
      %v1045 = vmul.f32 %v1042, 1.442695
      %v1046 = vpow.pop %v1045
      %v1047 = vmul.f32 %v1043, 1.442695
      %v1048 = vpow.pop %v1047
      %v1049 = vmul.f32 %v1044, 1.442695
      %v1050 = vpow.pop %v1049
      %v1051 = vadd.f32 %v1046, 1.0
      %v1052 = vadd.f32 %v1048, 1.0
      %v1053 = vadd.f32 %v1050, 1.0
      %v1054 = vrcp.pop %v1051
      %v1055 = vmul.f32 1.0, %v1054
      %v1056 = vrcp.pop %v1052
      %v1057 = vmul.f32 1.0, %v1056
      %v1058 = vrcp.pop %v1053
      %v1059 = vmul.f32 1.0, %v1058
      %v1060 = vmul.f32 %v1039, %v1055
      %v1061 = vmul.f32 %v1040, %v1057
      %v1062 = vmul.f32 %v1041, %v1059
      %vm1063 = vcmask 64516
      %1064 = vst.msk [vmem:[%s280 - $0x4] sm:$0xf0] %vm1063, %v1060
      %1065 = vst.msk [vmem:[%s280 + $0x4] sm:$0xff] %vm617, %v1061
      %1066 = vst.msk [vmem:[%s280 + $0xc] sm:$0xf] %vm615, %v1062
      %s1067 = smul.u32 2, %s18
      %p1068 = scmp.lt.s32.totalorder %s1067, 3
      %s1069 = scalar_select %p1068, %s1067, 3
      %s1070 = smul.addr %s1069, 8
      %s1071 = scalar_lea.vmem %s7, %s1070
      // Predicated region
      $region49: #{tpu_custom_call.1} parent=47 // pred_check
        %p1072 = pneg %p188
      $region50: #{tpu_custom_call.1} parent=47 // pred_check_branch
        %1074 = sbr.rel (%p1072) target = $region52
      $region51: #{tpu_custom_call.1} parent=47 // pred_region
        %s1075 = smul.u32 2, %s18
      $region52: #{tpu_custom_call.1} parent=47 // pred_fallthru
        _
    $region48: #{tpu_custom_call.1} parent=5 // pred_fallthru
      _
    %p1076 = scmp.le.s32.totalorder 2, %s13
    // Predicated region
    $region53: #{tpu_custom_call.1} parent=5 // pred_check
      %p1077 = pneg %p1076
    $region54: #{tpu_custom_call.1} parent=5 // pred_check_branch
      %1079 = sbr.rel (%p1077) target = $region56
    $region55: #{tpu_custom_call.1} parent=5 // pred_region
      %s1080 = ssub.s32 %s13, 2
      // Predicated region
      $region57: #{tpu_custom_call.1} parent=55 // pred_check
        %p1081 = pneg %p194
      $region58: #{tpu_custom_call.1} parent=55 // pred_check_branch
        %1083 = sbr.rel (%p1081) target = $region60
      $region59: #{tpu_custom_call.1} parent=55 // pred_region
        %s1084 = smul.u32 2, %s19
        %p1085 = scmp.lt.s32.totalorder %s1084, 3
        %s1086 = scalar_select %p1085, %s1084, 3
        %s1087 = smul.addr %s1086, 8
        %s1088 = scalar_lea.vmem %s7, %s1087
      $region60: #{tpu_custom_call.1} parent=55 // pred_fallthru
        _
    $region56: #{tpu_custom_call.1} parent=5 // pred_fallthru
      _
  $region6: #{tpu_custom_call.1} parent=0 // loop_footer
    %s17 = sadd.s32 1, %s13
  $region7: #{tpu_custom_call.1} parent=0 // loop_footer_branch
    %12 = sbr.rel target = $region3
  $region8: #{tpu_custom_call.1} parent=0 // loop_exit
    _

</llo_original>
